<compile_context>
chip_gen: v7x
topology: tpu7x:2x2x1
jax: 0.10.0
libtpu: 0.0.40
codegen_flags: <defaults>
</compile_context>

<pallas_src>
import functools

import jax
import jax.numpy as jnp
from jax.experimental import pallas as pl
from jax.experimental.pallas import tpu as pltpu


# ---------------------------------------------------------------------------
# Small helpers
# ---------------------------------------------------------------------------
def _round_up(v, m):
    return ((v + m - 1) // m) * m


def _pad2(a, rows, cols):
    return jnp.pad(a, ((0, rows - a.shape[0]), (0, cols - a.shape[1])))


def conv1d_as_dense(w, l_in, stride, pad):
    """Lower a PyTorch Conv1d weight (C_out, C_in, ks) to a dense matrix.

    Acts on channel-major flattened activations:
        out_flat[:, co*L_out + lo] = x_flat[:, ci*L_in + li] @ W_dense
    with W_dense[ci*L_in + li, co*L_out + lo] = w[co, ci, k] iff
        li == lo*stride + k - pad   (zero padding handled by dropped taps).
    """
    c_out, c_in, ks = w.shape
    l_out = (l_in + 2 * pad - ks) // stride + 1
    li = jnp.arange(l_in)[None, :, None]                       # (1, L_in, 1)
    lo = jnp.arange(l_out)[None, None, :]                      # (1, 1, L_out)
    k = jnp.arange(ks)[:, None, None]                          # (ks, 1, 1)
    taps = (li == lo * stride + k - pad).astype(w.dtype)       # (ks, L_in, L_out)
    w4d = jnp.einsum("ock,klp->clop", w, taps)                 # (C_in,L_in,C_out,L_out)
    return w4d.reshape(c_in * l_in, c_out * l_out), l_out


# ---------------------------------------------------------------------------
# Fused whole-network Pallas kernel
# ---------------------------------------------------------------------------
def _make_actor_kernel(conv_n_pads, c_h_pad, c_out_pad, matmul_dtype):
    """kernel(x, conv_w..., w3, w4, epi_slab, out).

    epi_slab rows: [scale_1, shift_1, ..., scale_n, shift_n, b3, b4] (f32).
    """
    n_conv = len(conv_n_pads)

    def kernel(*refs):
        x_ref = refs[0]
        w_refs = refs[1:1 + n_conv]
        w3_ref, w4_ref, epi_ref = refs[1 + n_conv:1 + n_conv + 3]
        o_ref = refs[-1]

        h = x_ref[...]                                          # bf16/f32, pre-cast
        # Conv layers: GEMM -> ReLU -> folded-BN scale/shift (Conv->ReLU->BN).
        for i in range(n_conv):
            acc = jnp.dot(h, w_refs[i][...], preferred_element_type=jnp.float32)
            n_pad = conv_n_pads[i]
            scale = epi_ref[2 * i:2 * i + 1, :n_pad]            # (1, n_pad) f32
            shift = epi_ref[2 * i + 1:2 * i + 2, :n_pad]
            h = (jnp.maximum(acc, 0.0) * scale + shift).astype(matmul_dtype)
        # MLP head: Linear -> ReLU, Linear -> tanh.
        acc = jnp.dot(h, w3_ref[...], preferred_element_type=jnp.float32)
        b3 = epi_ref[2 * n_conv:2 * n_conv + 1, :c_h_pad]
        h = jnp.maximum(acc + b3, 0.0).astype(matmul_dtype)
        acc = jnp.dot(h, w4_ref[...], preferred_element_type=jnp.float32)
        b4 = epi_ref[2 * n_conv + 1:2 * n_conv + 2, :c_out_pad]
        o_ref[...] = jnp.tanh(acc + b4)

    return kernel


def actor_net_forward(kp, x, row_tile=256):
    """x: (N, c_in, L) float32  ->  (N, c_out) float32 in (-1, 1)."""
    n, c_in, l = x.shape
    # Channel-major flatten (ci*L + li) matches the dense conv matrix rows.
    x_flat = x.reshape(n, c_in * l)
    assert x_flat.shape[1] == kp["k_in"], (x_flat.shape, kp["k_in"])

    mdt = kp["matmul_dtype"]
    kernel = _make_actor_kernel(kp["conv_n_pads"], kp["c_h_pad"],
                                kp["n_out_pad"], mdt)
    weights = [*kp["conv_w"], kp["w3"], kp["w4"], kp["epi"]]

    def cost(m_rows, x_p):
        return pl.CostEstimate(
            flops=int(2 * m_rows * kp["sum_kn"]),
            transcendentals=int(m_rows * kp["n_out_pad"]),
            bytes_accessed=int(kp["weight_bytes"]
                               + x_p.size * x_p.dtype.itemsize
                               + m_rows * kp["n_out_pad"] * 4))

    if n <= row_tile:
        # Latency path: single ungridded launch, everything VMEM-resident,
        # no pipeline/double-buffering machinery for a 1-step "grid".
        m_pad = _round_up(max(n, 1), 8)
        x_p = jnp.pad(x_flat, ((0, m_pad - n),
                               (0, kp["k_in_pad"] - kp["k_in"]))).astype(mdt)
        vmem = pl.BlockSpec(memory_space=pltpu.MemorySpace.VMEM)
        y = pl.pallas_call(
            kernel,
            out_shape=jax.ShapeDtypeStruct((m_pad, kp["n_out_pad"]), jnp.float32),
            in_specs=[vmem] * (1 + len(weights)),
            out_specs=vmem,
            cost_estimate=cost(m_pad, x_p),
        )(x_p, *weights)
    else:
        # Rollout path: row-tile the batch; weights keep a constant block index
        # so they stay VMEM-resident; batch axis is parallel (v7x: 2 TCs).
        m_pad = _round_up(n, row_tile)
        x_p = jnp.pad(x_flat, ((0, m_pad - n),
                               (0, kp["k_in_pad"] - kp["k_in"]))).astype(mdt)
        in_specs = [pl.BlockSpec((row_tile, kp["k_in_pad"]), lambda i: (i, 0))]
        in_specs += [pl.BlockSpec(w.shape, lambda i: (0, 0)) for w in weights]
        y = pl.pallas_call(
            kernel,
            out_shape=jax.ShapeDtypeStruct((m_pad, kp["n_out_pad"]), jnp.float32),
            grid=(m_pad // row_tile,),
            in_specs=in_specs,
            out_specs=pl.BlockSpec((row_tile, kp["n_out_pad"]), lambda i: (i, 0)),
            compiler_params=pltpu.CompilerParams(
                dimension_semantics=("parallel",)),
            cost_estimate=cost(m_pad, x_p),
        )(x_p, *weights)
    return y[:n, :kp["c_out"]]


# ---------------------------------------------------------------------------
# Parameters: torch-like init + one-time kernel-ready prep (hoisted)
# ---------------------------------------------------------------------------
def init_actor_net(key, cs, c_in=4, c_h=50, c_out=4, size=24):
    ks_list = [5] + [3] * (len(cs) - 1)
    stride_list = [1] + [2] * (len(cs) - 1)

    keys = jax.random.split(key, 3 * len(cs) + 4)
    kidx = 0
    convs = []
    prev, L = c_in, size
    for i, c in enumerate(cs):
        ks, s = ks_list[i], stride_list[i]
        w = 0.1 * jax.random.normal(keys[kidx], (c, prev, ks), jnp.float32); kidx += 1
        gamma = jax.random.uniform(keys[kidx], (c,), jnp.float32, 0.5, 1.5); kidx += 1
        beta = 0.1 * jax.random.normal(keys[kidx], (c,), jnp.float32); kidx += 1
        convs.append(dict(w=w, gamma=gamma, beta=beta,
                          mean=jnp.zeros((c,), jnp.float32),
                          var=jnp.ones((c,), jnp.float32)))
        L = (L + 2 * (ks // 2) - ks) // s + 1
        prev = c

    c_m = prev * L  # channels * length after conv stack (PyTorch probes this)
    w1 = 0.1 * jax.random.normal(keys[kidx], (c_m, c_h), jnp.float32); kidx += 1
    b1 = 0.1 * jax.random.normal(keys[kidx], (c_h,), jnp.float32); kidx += 1
    w2 = 0.1 * jax.random.normal(keys[kidx], (c_h, c_out), jnp.float32); kidx += 1
    b2 = 0.1 * jax.random.normal(keys[kidx], (c_out,), jnp.float32); kidx += 1

    params = dict(convs=convs, w1=w1, b1=b1, w2=w2, b2=b2)
    static = dict(ks=ks_list, stride=stride_list, c_m=c_m, size=size, c_in=c_in)
    return params, static


def prepare_actor_params(params, static, eps=1e-5, matmul_dtype=jnp.bfloat16):
    """One-time lowering of torch-style params into padded kernel operands.

    Weights are stored in `matmul_dtype` (bf16 by default: halves HBM->VMEM
    traffic, native MXU path).  All epilogue vectors are packed into one
    (8, max_N) f32 slab.
    """
    l = static["size"]
    k_in = static["c_in"] * l
    k_prev, k_prev_pad = k_in, _round_up(k_in, 128)
    k_in_pad = k_prev_pad

    conv_w, conv_n_pads, epi_rows = [], [], []
    for i, cp in enumerate(params["convs"]):
        ks, s = static["ks"][i], static["stride"][i]
        wd, l = conv1d_as_dense(cp["w"], l, s, ks // 2)          # (k_prev, c*l_out)
        n_cur = wd.shape[1]
        n_cur_pad = _round_up(n_cur, 128)
        scale = cp["gamma"] / jnp.sqrt(cp["var"] + eps)          # BN folded (eval)
        shift = cp["beta"] - cp["mean"] * scale
        conv_w.append(_pad2(wd, k_prev_pad, n_cur_pad).astype(matmul_dtype))
        conv_n_pads.append(n_cur_pad)
        epi_rows.append(jnp.repeat(scale, l))                    # per-column scale
        epi_rows.append(jnp.repeat(shift, l))                    # per-column shift
        k_prev, k_prev_pad = n_cur, n_cur_pad

    c_m, c_h = params["w1"].shape
    c_out = params["w2"].shape[1]
    assert c_m == k_prev, (c_m, k_prev)
    c_h_pad = _round_up(c_h, 128)
    c_out_pad = _round_up(c_out, 128)

    w3 = _pad2(params["w1"], k_prev_pad, c_h_pad).astype(matmul_dtype)
    w4 = _pad2(params["w2"], c_h_pad, c_out_pad).astype(matmul_dtype)
    epi_rows += [params["b1"], params["b2"]]

    # One consolidated epilogue slab (zero padding propagates zeros exactly).
    max_n = max(conv_n_pads + [c_h_pad, c_out_pad])
    epi = jnp.zeros((_round_up(len(epi_rows), 8), max_n), jnp.float32)
    for r, v in enumerate(epi_rows):
        epi = epi.at[r, :v.shape[0]].set(v.astype(jnp.float32))

    # Static cost-model numbers (per padded row).
    dims = [(k_in_pad, conv_n_pads[0])]
    for i in range(1, len(conv_n_pads)):
        dims.append((conv_n_pads[i - 1], conv_n_pads[i]))
    dims += [(conv_n_pads[-1], c_h_pad), (c_h_pad, c_out_pad)]
    sum_kn = sum(kk * nn for kk, nn in dims)
    weight_bytes = sum(int(w.size) * w.dtype.itemsize
                       for w in conv_w + [w3, w4, epi])

    return dict(
        conv_w=conv_w, conv_n_pads=conv_n_pads,
        w3=w3, w4=w4, epi=epi,
        k_in=k_in, k_in_pad=k_in_pad,
        c_h_pad=c_h_pad, n_out_pad=c_out_pad, c_out=c_out,
        matmul_dtype=matmul_dtype,
        sum_kn=sum_kn, weight_bytes=weight_bytes,
    )


# ---------------------------------------------------------------------------
# Pure-JAX reference (for in-script correctness check only)
# ---------------------------------------------------------------------------
def reference_forward(params, static, x, eps=1e-5):
    h = x
    for i, cp in enumerate(params["convs"]):
        ks, s = static["ks"][i], static["stride"][i]
        h = jax.lax.conv_general_dilated(
            h, cp["w"], window_strides=(s,), padding=[(ks // 2, ks // 2)],
            dimension_numbers=("NCH", "OIH", "NCH"))
        h = jnp.maximum(h, 0.0)                                  # Conv -> ReLU -> BN
        scale = cp["gamma"] / jnp.sqrt(cp["var"] + eps)
        shift = cp["beta"] - cp["mean"] * scale
        h = h * scale[None, :, None] + shift[None, :, None]
    h = h.reshape(h.shape[0], -1)
    h = jnp.maximum(h @ params["w1"] + params["b1"], 0.0)
    return jnp.tanh(h @ params["w2"] + params["b2"])


# ---------------------------------------------------------------------------
if __name__ == "__main__":
    key = jax.random.PRNGKey(0)
    k_params, k_x, k_x2 = jax.random.split(key, 3)

    cs = (8, 16)                 # 4 -> 8 (ks5, s1), 8 -> 16 (ks3, s2)
    batch, c_in, L = 2, 4, 24
    c_h, c_out = 50, 4

    params, static = init_actor_net(k_params, cs, c_in=c_in, c_h=c_h,
                                    c_out=c_out, size=L)
    kp = prepare_actor_params(params, static)        # bf16 weights, hoisted prep

    fwd = jax.jit(functools.partial(actor_net_forward, kp))

    # --- small latency-critical case: single ungridded launch ---------------
    x = jax.random.normal(k_x, (batch, c_in, L), jnp.float32)
    out = jax.block_until_ready(fwd(x))
    assert out.shape == (batch, c_out), out.shape
    assert bool(jnp.all(jnp.abs(out) <= 1.0)), "tanh output out of range"
    ref = reference_forward(params, static, x)
    # bf16 matmul path: tolerance relaxed vs the f32 reference (documented).
    assert bool(jnp.allclose(out, ref, atol=5e-2, rtol=5e-2)), (
        "mismatch vs reference, max abs err = %e"
        % float(jnp.max(jnp.abs(out - ref))))

    # --- rollout-sized batch: row-tiled, parallel grid over the batch -------
    big = 300
    xb = jax.random.normal(k_x2, (big, c_in, L), jnp.float32)
    outb = jax.block_until_ready(fwd(xb))
    refb = reference_forward(params, static, xb)
    assert outb.shape == (big, c_out), outb.shape
    assert bool(jnp.allclose(outb, refb, atol=5e-2, rtol=5e-2)), (
        "tiled-path mismatch vs reference, max abs err = %e"
        % float(jnp.max(jnp.abs(outb - refb))))

    print("KERNEL_OK")
</pallas_src>

<mosaic_0001>
module attributes {stable_mosaic.version = 11 : i64} {
  func.func @kernel(%arg0: memref<8x128xbf16, #tpu.memory_space<vmem>>, %arg1: memref<128x256xbf16, #tpu.memory_space<vmem>>, %arg2: memref<256x256xbf16, #tpu.memory_space<vmem>>, %arg3: memref<256x128xbf16, #tpu.memory_space<vmem>>, %arg4: memref<128x128xbf16, #tpu.memory_space<vmem>>, %arg5: memref<8x256xf32, #tpu.memory_space<vmem>>, %arg6: memref<8x128xf32, #tpu.memory_space<vmem>>) attributes {dimension_semantics = [], scalar_prefetch = 0 : i64, scratch_operands = 0 : i64, tpu.core_type = #tpu.core_type<tc>} {
    %c0 = arith.constant 0 : index
    %c0_0 = arith.constant 0 : index
    %0 = vector.load %arg0[%c0, %c0_0] : memref<8x128xbf16, #tpu.memory_space<vmem>>, vector<8x128xbf16>
    %c0_1 = arith.constant 0 : index
    %c0_2 = arith.constant 0 : index
    %1 = vector.load %arg1[%c0_1, %c0_2] : memref<128x256xbf16, #tpu.memory_space<vmem>>, vector<128x256xbf16>
    %cst = arith.constant dense<0.000000e+00> : vector<8x256xf32>
    %2 = tpu.matmul %0, %1, %cst {dimension_numbers = #tpu.dot_dimension_numbers<[1], [0], [0], [1], [0, 0, 1, 1], [], []>} : vector<8x128xbf16>, vector<128x256xbf16>, vector<8x256xf32> -> vector<8x256xf32>
    %c0_3 = arith.constant 0 : index
    %c0_4 = arith.constant 0 : index
    %3 = vector.load %arg5[%c0_3, %c0_4] : memref<8x256xf32, #tpu.memory_space<vmem>>, vector<1x256xf32>
    %c1 = arith.constant 1 : index
    %c0_5 = arith.constant 0 : index
    %4 = vector.load %arg5[%c1, %c0_5] : memref<8x256xf32, #tpu.memory_space<vmem>>, vector<1x256xf32>
    %cst_6 = arith.constant 0.000000e+00 : f32
    %5 = vector.broadcast %cst_6 : f32 to vector<8x256xf32>
    %6 = arith.maximumf %2, %5 : vector<8x256xf32>
    %7 = vector.broadcast %3 : vector<1x256xf32> to vector<8x256xf32>
    %8 = arith.mulf %6, %7 : vector<8x256xf32>
    %9 = vector.broadcast %4 : vector<1x256xf32> to vector<8x256xf32>
    %10 = arith.addf %8, %9 : vector<8x256xf32>
    %11 = arith.truncf %10 : vector<8x256xf32> to vector<8x256xbf16>
    %c0_7 = arith.constant 0 : index
    %c0_8 = arith.constant 0 : index
    %12 = vector.load %arg2[%c0_7, %c0_8] : memref<256x256xbf16, #tpu.memory_space<vmem>>, vector<256x256xbf16>
    %cst_9 = arith.constant dense<0.000000e+00> : vector<8x256xf32>
    %13 = tpu.matmul %11, %12, %cst_9 {dimension_numbers = #tpu.dot_dimension_numbers<[1], [0], [0], [1], [0, 0, 1, 1], [], []>} : vector<8x256xbf16>, vector<256x256xbf16>, vector<8x256xf32> -> vector<8x256xf32>
    %c2 = arith.constant 2 : index
    %c0_10 = arith.constant 0 : index
    %14 = vector.load %arg5[%c2, %c0_10] : memref<8x256xf32, #tpu.memory_space<vmem>>, vector<1x256xf32>
    %c3 = arith.constant 3 : index
    %c0_11 = arith.constant 0 : index
    %15 = vector.load %arg5[%c3, %c0_11] : memref<8x256xf32, #tpu.memory_space<vmem>>, vector<1x256xf32>
    %cst_12 = arith.constant 0.000000e+00 : f32
    %16 = vector.broadcast %cst_12 : f32 to vector<8x256xf32>
    %17 = arith.maximumf %13, %16 : vector<8x256xf32>
    %18 = vector.broadcast %14 : vector<1x256xf32> to vector<8x256xf32>
    %19 = arith.mulf %17, %18 : vector<8x256xf32>
    %20 = vector.broadcast %15 : vector<1x256xf32> to vector<8x256xf32>
    %21 = arith.addf %19, %20 : vector<8x256xf32>
    %22 = arith.truncf %21 : vector<8x256xf32> to vector<8x256xbf16>
    %c0_13 = arith.constant 0 : index
    %c0_14 = arith.constant 0 : index
    %23 = vector.load %arg3[%c0_13, %c0_14] : memref<256x128xbf16, #tpu.memory_space<vmem>>, vector<256x128xbf16>
    %cst_15 = arith.constant dense<0.000000e+00> : vector<8x128xf32>
    %24 = tpu.matmul %22, %23, %cst_15 {dimension_numbers = #tpu.dot_dimension_numbers<[1], [0], [0], [1], [0, 0, 1, 1], [], []>} : vector<8x256xbf16>, vector<256x128xbf16>, vector<8x128xf32> -> vector<8x128xf32>
    %c4 = arith.constant 4 : index
    %c0_16 = arith.constant 0 : index
    %25 = vector.load %arg5[%c4, %c0_16] : memref<8x256xf32, #tpu.memory_space<vmem>>, vector<1x128xf32>
    %26 = vector.broadcast %25 : vector<1x128xf32> to vector<8x128xf32>
    %27 = arith.addf %24, %26 : vector<8x128xf32>
    %cst_17 = arith.constant 0.000000e+00 : f32
    %28 = vector.broadcast %cst_17 : f32 to vector<8x128xf32>
    %29 = arith.maximumf %27, %28 : vector<8x128xf32>
    %30 = arith.truncf %29 : vector<8x128xf32> to vector<8x128xbf16>
    %c0_18 = arith.constant 0 : index
    %c0_19 = arith.constant 0 : index
    %31 = vector.load %arg4[%c0_18, %c0_19] : memref<128x128xbf16, #tpu.memory_space<vmem>>, vector<128x128xbf16>
    %cst_20 = arith.constant dense<0.000000e+00> : vector<8x128xf32>
    %32 = tpu.matmul %30, %31, %cst_20 {dimension_numbers = #tpu.dot_dimension_numbers<[1], [0], [0], [1], [0, 0, 1, 1], [], []>} : vector<8x128xbf16>, vector<128x128xbf16>, vector<8x128xf32> -> vector<8x128xf32>
    %c5 = arith.constant 5 : index
    %c0_21 = arith.constant 0 : index
    %33 = vector.load %arg5[%c5, %c0_21] : memref<8x256xf32, #tpu.memory_space<vmem>>, vector<1x128xf32>
    %34 = vector.broadcast %33 : vector<1x128xf32> to vector<8x128xf32>
    %35 = arith.addf %32, %34 : vector<8x128xf32>
    %36 = math.tanh %35 : vector<8x128xf32>
    %c0_22 = arith.constant 0 : index
    %c0_23 = arith.constant 0 : index
    %37 = vector.load %arg6[%c0_22, %c0_23] : memref<8x128xf32, #tpu.memory_space<vmem>>, vector<8x128xf32>
    tpu.vector_store %arg6[%c0_22, %c0_23], %36 {strides = array<i32>} : memref<8x128xf32, #tpu.memory_space<vmem>>, vector<8x128xf32>,
    return
  }
}

</mosaic_0001>

<llo_original>
// kernel: actor_net_forward.1
$region0: #{actor_net_forward.1}
  #allocation0 [shape = 'u32[]', space=smem, size = 0x4, offset = 0x4, fixed_abs, tag = 'smem constant byte address 0x4 - core index']
  #allocation1 [shape = 'u32[144,128]{1,0:T(1,128)}', space=vmem, size = 0x12000, scoped, tag = 'internal scratch']
  %s0 = inlined_call_operand.vmem [shape: bf16[8,128], index: 0, kind: input, shape index: {}]
  %s1 = inlined_call_operand.vmem [shape: bf16[128,256], index: 1, kind: input, shape index: {}]
  %s2 = inlined_call_operand.vmem [shape: bf16[256,256], index: 2, kind: input, shape index: {}]
  %s3 = inlined_call_operand.vmem [shape: bf16[256,128], index: 3, kind: input, shape index: {}]
  %s4 = inlined_call_operand.vmem [shape: bf16[128,128], index: 4, kind: input, shape index: {}]
  %s5 = inlined_call_operand.vmem [shape: f32[8,256], index: 5, kind: input, shape index: {}]
  %s6 = inlined_call_operand.vmem [shape: f32[8,128], index: 6, kind: output, shape index: {}]
  %s7 = sld [smem:[#allocation0]]
  $region34: #{actor_net_forward.1} parent=0
    _
  %s9 = ssub.s32 1, %s7
  %s10 = scalar_select 0, %s9, %s7
  // Predicated region
  $region2: #{actor_net_forward.1} parent=0 // pred_check
    _
  $region3: #{actor_net_forward.1} parent=0 // pred_check_branch
    %12 = sbr.rel (0) target = $region5
  $region4: #{actor_net_forward.1} parent=0 // pred_region
    _
  $region5: #{actor_net_forward.1} parent=0 // pred_fallthru
    _
  // Predicated region
  $region6: #{actor_net_forward.1} parent=0 // pred_check
    _
  $region7: #{actor_net_forward.1} parent=0 // pred_check_branch
    %14 = sbr.rel (0) target = $region9
  $region8: #{actor_net_forward.1} parent=0 // pred_region
    _
  $region9: #{actor_net_forward.1} parent=0 // pred_fallthru
    _
  // Predicated region
  $region10: #{actor_net_forward.1} parent=0 // pred_check
    _
  $region11: #{actor_net_forward.1} parent=0 // pred_check_branch
    %16 = sbr.rel (0) target = $region13
  $region12: #{actor_net_forward.1} parent=0 // pred_region
    _
  $region13: #{actor_net_forward.1} parent=0 // pred_fallthru
    _
  // Predicated region
  $region14: #{actor_net_forward.1} parent=0 // pred_check
    _
  $region15: #{actor_net_forward.1} parent=0 // pred_check_branch
    %18 = sbr.rel (0) target = $region17
  $region16: #{actor_net_forward.1} parent=0 // pred_region
    _
  $region17: #{actor_net_forward.1} parent=0 // pred_fallthru
    _
  // Predicated region
  $region18: #{actor_net_forward.1} parent=0 // pred_check
    _
  $region19: #{actor_net_forward.1} parent=0 // pred_check_branch
    %20 = sbr.rel (0) target = $region21
  $region20: #{actor_net_forward.1} parent=0 // pred_region
    _
  $region21: #{actor_net_forward.1} parent=0 // pred_fallthru
    _
  // Predicated region
  $region22: #{actor_net_forward.1} parent=0 // pred_check
    _
  $region23: #{actor_net_forward.1} parent=0 // pred_check_branch
    %22 = sbr.rel (0) target = $region25
  $region24: #{actor_net_forward.1} parent=0 // pred_region
    _
  $region25: #{actor_net_forward.1} parent=0 // pred_fallthru
    _
  %v24 = vld [vmem:[%s0] sm:$0xf]
  %v25 = vld [vmem:[%s1] sm:$0xff]
  %v26 = vld [vmem:[%s1 + $0x8] sm:$0xff]
  %v27 = vld [vmem:[%s1 + $0x10] sm:$0xff]
  %v28 = vld [vmem:[%s1 + $0x18] sm:$0xff]
  %v29 = vld [vmem:[%s1 + $0x20] sm:$0xff]
  %v30 = vld [vmem:[%s1 + $0x28] sm:$0xff]
  %v31 = vld [vmem:[%s1 + $0x30] sm:$0xff]
  %v32 = vld [vmem:[%s1 + $0x38] sm:$0xff]
  %v33 = vld [vmem:[%s1 + $0x40] sm:$0xff]
  %v34 = vld [vmem:[%s1 + $0x48] sm:$0xff]
  %v35 = vld [vmem:[%s1 + $0x50] sm:$0xff]
  %v36 = vld [vmem:[%s1 + $0x58] sm:$0xff]
  %v37 = vld [vmem:[%s1 + $0x60] sm:$0xff]
  %v38 = vld [vmem:[%s1 + $0x68] sm:$0xff]
  %v39 = vld [vmem:[%s1 + $0x70] sm:$0xff]
  %v40 = vld [vmem:[%s1 + $0x78] sm:$0xff]
  %v57 = vunpack.c.l.b16 %v25
  %v58 = vunpack.c.h.b16 %v25
  %v59 = vunpack.c.l.b16 %v26
  %v60 = vunpack.c.h.b16 %v26
  %v61 = vunpack.c.l.b16 %v27
  %v62 = vunpack.c.h.b16 %v27
  %v63 = vunpack.c.l.b16 %v28
  %v64 = vunpack.c.h.b16 %v28
  %v65 = vunpack.c.l.b16 %v29
  %v66 = vunpack.c.h.b16 %v29
  %v67 = vunpack.c.l.b16 %v30
  %v68 = vunpack.c.h.b16 %v30
  %v69 = vunpack.c.l.b16 %v31
  %v70 = vunpack.c.h.b16 %v31
  %v71 = vunpack.c.l.b16 %v32
  %v72 = vunpack.c.h.b16 %v32
  %v73 = vunpack.c.l.b16 %v33
  %v74 = vunpack.c.h.b16 %v33
  %v75 = vunpack.c.l.b16 %v34
  %v76 = vunpack.c.h.b16 %v34
  %v77 = vunpack.c.l.b16 %v35
  %v78 = vunpack.c.h.b16 %v35
  %v79 = vunpack.c.l.b16 %v36
  %v80 = vunpack.c.h.b16 %v36
  %v81 = vunpack.c.l.b16 %v37
  %v82 = vunpack.c.h.b16 %v37
  %v83 = vunpack.c.l.b16 %v38
  %v84 = vunpack.c.h.b16 %v38
  %v85 = vunpack.c.l.b16 %v39
  %v86 = vunpack.c.h.b16 %v39
  %v87 = vunpack.c.l.b16 %v40
  %v88 = vunpack.c.h.b16 %v40
  %v89 = vpack.c.b16 %v59, %v57
  %v90 = vpack.c.b16 %v60, %v58
  %v91 = vpack.c.b16 %v63, %v61
  %v92 = vpack.c.b16 %v64, %v62
  %v93 = vpack.c.b16 %v67, %v65
  %v94 = vpack.c.b16 %v68, %v66
  %v95 = vpack.c.b16 %v71, %v69
  %v96 = vpack.c.b16 %v72, %v70
  %v97 = vpack.c.b16 %v75, %v73
  %v98 = vpack.c.b16 %v76, %v74
  %v99 = vpack.c.b16 %v79, %v77
  %v100 = vpack.c.b16 %v80, %v78
  %v101 = vpack.c.b16 %v83, %v81
  %v102 = vpack.c.b16 %v84, %v82
  %v103 = vpack.c.b16 %v87, %v85
  %v104 = vpack.c.b16 %v88, %v86
  %121 = vmatprep.subr.bf16.mxu0 %v90
  %122 = vmatpush1.bf16.msra.mxu0 %v89
  %123 = vmatprep.subr.bf16.mxu0 %v92
  %124 = vmatpush1.bf16.msra.mxu0 %v91
  %125 = vmatprep.subr.bf16.mxu0 %v94
  %126 = vmatpush1.bf16.msra.mxu0 %v93
  %127 = vmatprep.subr.bf16.mxu0 %v96
  %128 = vmatpush1.bf16.msra.mxu0 %v95
  %129 = vmatprep.subr.bf16.mxu0 %v98
  %130 = vmatpush1.bf16.msra.mxu0 %v97
  %131 = vmatprep.subr.bf16.mxu0 %v100
  %132 = vmatpush1.bf16.msra.mxu0 %v99
  %133 = vmatprep.subr.bf16.mxu0 %v102
  %134 = vmatpush1.bf16.msra.mxu0 %v101
  %135 = vmatprep.subr.bf16.mxu0 %v104
  %136 = vmatpush1.bf16.msra.mxu0 %v103
  %137 = vmatprep.subr.bf16.mxu0 0
  %138 = vmatpush1.bf16.msra.mxu0 0
  %139 = vmatprep.subr.bf16.mxu0 0
  %140 = vmatpush1.bf16.msra.mxu0 0
  %141 = vmatprep.subr.bf16.mxu0 0
  %142 = vmatpush1.bf16.msra.mxu0 0
  %143 = vmatprep.subr.bf16.mxu0 0
  %144 = vmatpush1.bf16.msra.mxu0 0
  %145 = vmatprep.subr.bf16.mxu0 0
  %146 = vmatpush1.bf16.msra.mxu0 0
  %147 = vmatprep.subr.bf16.mxu0 0
  %148 = vmatpush1.bf16.msra.mxu0 0
  %149 = vmatprep.subr.bf16.mxu0 0
  %150 = vmatpush1.bf16.msra.mxu0 0
  %151 = vmatprep.subr.bf16.mxu0 0
  %152 = vmatpush1.bf16.msra.mxu0 0
  %153 = vmatprep.mubr.bf16.mxu0 0
  %154 = vmatmul.mubr.bf16.gmra.mrb[0].mxu0 %v24
  %v155 = vpop.f32.mrb[0].mxu0
  %v156 = vadd.f32 0.0, %v155
  %v157 = vpop.f32.mrb[0].mxu0
  %v158 = vadd.f32 0.0, %v157
  %v159 = vpop.f32.mrb[0].mxu0
  %v160 = vpop.f32.mrb[0].mxu0
  %161 = vdwg.mxu0
  %v162 = vld [vmem:[%s5] ss:$8 sm:$0x3]
  %s163 = scalar_lea.vmem %s5, 1
  %v164 = vld [vmem:[%s163] ss:$8 sm:$0x3]
  %v165 = vmax.f32 %v156, 0.0
  %v166 = vmax.f32 %v158, 0.0
  %v168 = vlaneseq
  %v169 = vshrl.u32 %v168, 7
  %v170 = vsub.s32 0, %v169
  %v171 = vrot.slane %v162, %v170
  %v172 = vlaneseq
  %v173 = vshrl.u32 %v172, 7
  %v174 = vsub.s32 1, %v173
  %v175 = vrot.slane %v162, %v174
  %v178 = vmul.f32 %v165, %v171
  %v179 = vmul.f32 %v166, %v175
  %v181 = vlaneseq
  %v182 = vshrl.u32 %v181, 7
  %v183 = vsub.s32 0, %v182
  %v184 = vrot.slane %v164, %v183
  %v185 = vlaneseq
  %v186 = vshrl.u32 %v185, 7
  %v187 = vsub.s32 1, %v186
  %v188 = vrot.slane %v164, %v187
  %v191 = vadd.f32 %v178, %v184
  %v192 = vadd.f32 %v179, %v188
  %v193 = vpack.c.bf16 %v191, %v191
  %v194 = vpack.c.bf16 %v192, %v192
  %v195 = vld [vmem:[%s2] sm:$0xff]
  %v196 = vld [vmem:[%s2 + $0x8] sm:$0xff]
  %v197 = vld [vmem:[%s2 + $0x10] sm:$0xff]
  %v198 = vld [vmem:[%s2 + $0x18] sm:$0xff]
  %v199 = vld [vmem:[%s2 + $0x20] sm:$0xff]
  %v200 = vld [vmem:[%s2 + $0x28] sm:$0xff]
  %v201 = vld [vmem:[%s2 + $0x30] sm:$0xff]
  %v202 = vld [vmem:[%s2 + $0x38] sm:$0xff]
  %v203 = vld [vmem:[%s2 + $0x40] sm:$0xff]
  %v204 = vld [vmem:[%s2 + $0x48] sm:$0xff]
  %v205 = vld [vmem:[%s2 + $0x50] sm:$0xff]
  %v206 = vld [vmem:[%s2 + $0x58] sm:$0xff]
  %v207 = vld [vmem:[%s2 + $0x60] sm:$0xff]
  %v208 = vld [vmem:[%s2 + $0x68] sm:$0xff]
  %v209 = vld [vmem:[%s2 + $0x70] sm:$0xff]
  %v210 = vld [vmem:[%s2 + $0x78] sm:$0xff]
  %v211 = vld [vmem:[%s2 + $0x80] sm:$0xff]
  %v212 = vld [vmem:[%s2 + $0x88] sm:$0xff]
  %v213 = vld [vmem:[%s2 + $0x90] sm:$0xff]
  %v214 = vld [vmem:[%s2 + $0x98] sm:$0xff]
  %v215 = vld [vmem:[%s2 + $0xa0] sm:$0xff]
  %v216 = vld [vmem:[%s2 + $0xa8] sm:$0xff]
  %v217 = vld [vmem:[%s2 + $0xb0] sm:$0xff]
  %v218 = vld [vmem:[%s2 + $0xb8] sm:$0xff]
  %v219 = vld [vmem:[%s2 + $0xc0] sm:$0xff]
  %v220 = vld [vmem:[%s2 + $0xc8] sm:$0xff]
  %v221 = vld [vmem:[%s2 + $0xd0] sm:$0xff]
  %v222 = vld [vmem:[%s2 + $0xd8] sm:$0xff]
  %v223 = vld [vmem:[%s2 + $0xe0] sm:$0xff]
  %v224 = vld [vmem:[%s2 + $0xe8] sm:$0xff]
  %v225 = vld [vmem:[%s2 + $0xf0] sm:$0xff]
  %v226 = vld [vmem:[%s2 + $0xf8] sm:$0xff]
  %v259 = vunpack.c.l.b16 %v195
  %v260 = vunpack.c.h.b16 %v195
  %v261 = vunpack.c.l.b16 %v196
  %v262 = vunpack.c.h.b16 %v196
  %v263 = vunpack.c.l.b16 %v197
  %v264 = vunpack.c.h.b16 %v197
  %v265 = vunpack.c.l.b16 %v198
  %v266 = vunpack.c.h.b16 %v198
  %v267 = vunpack.c.l.b16 %v199
  %v268 = vunpack.c.h.b16 %v199
  %v269 = vunpack.c.l.b16 %v200
  %v270 = vunpack.c.h.b16 %v200
  %v271 = vunpack.c.l.b16 %v201
  %v272 = vunpack.c.h.b16 %v201
  %v273 = vunpack.c.l.b16 %v202
  %v274 = vunpack.c.h.b16 %v202
  %v275 = vunpack.c.l.b16 %v203
  %v276 = vunpack.c.h.b16 %v203
  %v277 = vunpack.c.l.b16 %v204
  %v278 = vunpack.c.h.b16 %v204
  %v279 = vunpack.c.l.b16 %v205
  %v280 = vunpack.c.h.b16 %v205
  %v281 = vunpack.c.l.b16 %v206
  %v282 = vunpack.c.h.b16 %v206
  %v283 = vunpack.c.l.b16 %v207
  %v284 = vunpack.c.h.b16 %v207
  %v285 = vunpack.c.l.b16 %v208
  %v286 = vunpack.c.h.b16 %v208
  %v287 = vunpack.c.l.b16 %v209
  %v288 = vunpack.c.h.b16 %v209
  %v289 = vunpack.c.l.b16 %v210
  %v290 = vunpack.c.h.b16 %v210
  %v291 = vunpack.c.l.b16 %v211
  %v292 = vunpack.c.h.b16 %v211
  %v293 = vunpack.c.l.b16 %v212
  %v294 = vunpack.c.h.b16 %v212
  %v295 = vunpack.c.l.b16 %v213
  %v296 = vunpack.c.h.b16 %v213
  %v297 = vunpack.c.l.b16 %v214
  %v298 = vunpack.c.h.b16 %v214
  %v299 = vunpack.c.l.b16 %v215
  %v300 = vunpack.c.h.b16 %v215
  %v301 = vunpack.c.l.b16 %v216
  %v302 = vunpack.c.h.b16 %v216
  %v303 = vunpack.c.l.b16 %v217
  %v304 = vunpack.c.h.b16 %v217
  %v305 = vunpack.c.l.b16 %v218
  %v306 = vunpack.c.h.b16 %v218
  %v307 = vunpack.c.l.b16 %v219
  %v308 = vunpack.c.h.b16 %v219
  %v309 = vunpack.c.l.b16 %v220
  %v310 = vunpack.c.h.b16 %v220
  %v311 = vunpack.c.l.b16 %v221
  %v312 = vunpack.c.h.b16 %v221
  %v313 = vunpack.c.l.b16 %v222
  %v314 = vunpack.c.h.b16 %v222
  %v315 = vunpack.c.l.b16 %v223
  %v316 = vunpack.c.h.b16 %v223
  %v317 = vunpack.c.l.b16 %v224
  %v318 = vunpack.c.h.b16 %v224
  %v319 = vunpack.c.l.b16 %v225
  %v320 = vunpack.c.h.b16 %v225
  %v321 = vunpack.c.l.b16 %v226
  %v322 = vunpack.c.h.b16 %v226
  %v323 = vpack.c.b16 %v261, %v259
  %v324 = vpack.c.b16 %v262, %v260
  %v325 = vpack.c.b16 %v265, %v263
  %v326 = vpack.c.b16 %v266, %v264
  %v327 = vpack.c.b16 %v269, %v267
  %v328 = vpack.c.b16 %v270, %v268
  %v329 = vpack.c.b16 %v273, %v271
  %v330 = vpack.c.b16 %v274, %v272
  %v331 = vpack.c.b16 %v277, %v275
  %v332 = vpack.c.b16 %v278, %v276
  %v333 = vpack.c.b16 %v281, %v279
  %v334 = vpack.c.b16 %v282, %v280
  %v335 = vpack.c.b16 %v285, %v283
  %v336 = vpack.c.b16 %v286, %v284
  %v337 = vpack.c.b16 %v289, %v287
  %v338 = vpack.c.b16 %v290, %v288
  %v339 = vpack.c.b16 %v293, %v291
  %v340 = vpack.c.b16 %v294, %v292
  %v341 = vpack.c.b16 %v297, %v295
  %v342 = vpack.c.b16 %v298, %v296
  %v343 = vpack.c.b16 %v301, %v299
  %v344 = vpack.c.b16 %v302, %v300
  %v345 = vpack.c.b16 %v305, %v303
  %v346 = vpack.c.b16 %v306, %v304
  %v347 = vpack.c.b16 %v309, %v307
  %v348 = vpack.c.b16 %v310, %v308
  %v349 = vpack.c.b16 %v313, %v311
  %v350 = vpack.c.b16 %v314, %v312
  %v351 = vpack.c.b16 %v317, %v315
  %v352 = vpack.c.b16 %v318, %v316
  %v353 = vpack.c.b16 %v321, %v319
  %v354 = vpack.c.b16 %v322, %v320
  %387 = vmatprep.subr.bf16.mxu0 %v324
  %388 = vmatpush1.bf16.msra.mxu0 %v323
  %389 = vmatprep.subr.bf16.mxu0 %v326
  %390 = vmatpush1.bf16.msra.mxu0 %v325
  %391 = vmatprep.subr.bf16.mxu0 %v328
  %392 = vmatpush1.bf16.msra.mxu0 %v327
  %393 = vmatprep.subr.bf16.mxu0 %v330
  %394 = vmatpush1.bf16.msra.mxu0 %v329
  %395 = vmatprep.subr.bf16.mxu0 %v332
  %396 = vmatpush1.bf16.msra.mxu0 %v331
  %397 = vmatprep.subr.bf16.mxu0 %v334
  %398 = vmatpush1.bf16.msra.mxu0 %v333
  %399 = vmatprep.subr.bf16.mxu0 %v336
  %400 = vmatpush1.bf16.msra.mxu0 %v335
  %401 = vmatprep.subr.bf16.mxu0 %v338
  %402 = vmatpush1.bf16.msra.mxu0 %v337
  %403 = vmatprep.subr.bf16.mxu0 %v340
  %404 = vmatpush1.bf16.msra.mxu0 %v339
  %405 = vmatprep.subr.bf16.mxu0 %v342
  %406 = vmatpush1.bf16.msra.mxu0 %v341
  %407 = vmatprep.subr.bf16.mxu0 %v344
  %408 = vmatpush1.bf16.msra.mxu0 %v343
  %409 = vmatprep.subr.bf16.mxu0 %v346
  %410 = vmatpush1.bf16.msra.mxu0 %v345
  %411 = vmatprep.subr.bf16.mxu0 %v348
  %412 = vmatpush1.bf16.msra.mxu0 %v347
  %413 = vmatprep.subr.bf16.mxu0 %v350
  %414 = vmatpush1.bf16.msra.mxu0 %v349
  %415 = vmatprep.subr.bf16.mxu0 %v352
  %416 = vmatpush1.bf16.msra.mxu0 %v351
  %417 = vmatprep.subr.bf16.mxu0 %v354
  %418 = vmatpush1.bf16.msra.mxu0 %v353
  %419 = vmatprep.mubr.bf16.mxu0 %v194
  %420 = vmatmul.mubr.bf16.gmra.mrb[0].mxu0 %v193
  %v421 = vpop.f32.mrb[0].mxu0
  %v422 = vadd.f32 0.0, %v421
  %v423 = vpop.f32.mrb[0].mxu0
  %v424 = vadd.f32 0.0, %v423
  %v425 = vpop.f32.mrb[0].mxu0
  %v426 = vpop.f32.mrb[0].mxu0
  %427 = vdwg.mxu0
  %s428 = scalar_lea.vmem %s5, 2
  %v429 = vld [vmem:[%s428] ss:$8 sm:$0x3]
  %s430 = scalar_lea.vmem %s5, 3
  %v431 = vld [vmem:[%s430] ss:$8 sm:$0x3]
  %v432 = vmax.f32 %v422, 0.0
  %v433 = vmax.f32 %v424, 0.0
  %v435 = vlaneseq
  %v436 = vshrl.u32 %v435, 7
  %v437 = vsub.s32 0, %v436
  %v438 = vrot.slane %v429, %v437
  %v439 = vlaneseq
  %v440 = vshrl.u32 %v439, 7
  %v441 = vsub.s32 1, %v440
  %v442 = vrot.slane %v429, %v441
  %v445 = vmul.f32 %v432, %v438
  %v446 = vmul.f32 %v433, %v442
  %v448 = vlaneseq
  %v449 = vshrl.u32 %v448, 7
  %v450 = vsub.s32 0, %v449
  %v451 = vrot.slane %v431, %v450
  %v452 = vlaneseq
  %v453 = vshrl.u32 %v452, 7
  %v454 = vsub.s32 1, %v453
  %v455 = vrot.slane %v431, %v454
  %v458 = vadd.f32 %v445, %v451
  %v459 = vadd.f32 %v446, %v455
  %v460 = vpack.c.bf16 %v458, %v458
  %v461 = vpack.c.bf16 %v459, %v459
  %v462 = vld [vmem:[%s3] sm:$0xf]
  %v463 = vld [vmem:[%s3 + $0x4] sm:$0xf]
  %v464 = vld [vmem:[%s3 + $0x8] sm:$0xf]
  %v465 = vld [vmem:[%s3 + $0xc] sm:$0xf]
  %v466 = vld [vmem:[%s3 + $0x10] sm:$0xf]
  %v467 = vld [vmem:[%s3 + $0x14] sm:$0xf]
  %v468 = vld [vmem:[%s3 + $0x18] sm:$0xf]
  %v469 = vld [vmem:[%s3 + $0x1c] sm:$0xf]
  %v470 = vld [vmem:[%s3 + $0x20] sm:$0xf]
  %v471 = vld [vmem:[%s3 + $0x24] sm:$0xf]
  %v472 = vld [vmem:[%s3 + $0x28] sm:$0xf]
  %v473 = vld [vmem:[%s3 + $0x2c] sm:$0xf]
  %v474 = vld [vmem:[%s3 + $0x30] sm:$0xf]
  %v475 = vld [vmem:[%s3 + $0x34] sm:$0xf]
  %v476 = vld [vmem:[%s3 + $0x38] sm:$0xf]
  %v477 = vld [vmem:[%s3 + $0x3c] sm:$0xf]
  %v478 = vld [vmem:[%s3 + $0x40] sm:$0xf]
  %v479 = vld [vmem:[%s3 + $0x44] sm:$0xf]
  %v480 = vld [vmem:[%s3 + $0x48] sm:$0xf]
  %v481 = vld [vmem:[%s3 + $0x4c] sm:$0xf]
  %v482 = vld [vmem:[%s3 + $0x50] sm:$0xf]
  %v483 = vld [vmem:[%s3 + $0x54] sm:$0xf]
  %v484 = vld [vmem:[%s3 + $0x58] sm:$0xf]
  %v485 = vld [vmem:[%s3 + $0x5c] sm:$0xf]
  %v486 = vld [vmem:[%s3 + $0x60] sm:$0xf]
  %v487 = vld [vmem:[%s3 + $0x64] sm:$0xf]
  %v488 = vld [vmem:[%s3 + $0x68] sm:$0xf]
  %v489 = vld [vmem:[%s3 + $0x6c] sm:$0xf]
  %v490 = vld [vmem:[%s3 + $0x70] sm:$0xf]
  %v491 = vld [vmem:[%s3 + $0x74] sm:$0xf]
  %v492 = vld [vmem:[%s3 + $0x78] sm:$0xf]
  %v493 = vld [vmem:[%s3 + $0x7c] sm:$0xf]
  %v494 = vld [vmem:[%s5 + $0x4] ss:$0 sm:$0xff]
  %v527 = vunpack.c.l.b16 %v462
  %v528 = vunpack.c.l.b16 %v463
  %v529 = vunpack.c.l.b16 %v464
  %v530 = vunpack.c.l.b16 %v465
  %v531 = vunpack.c.l.b16 %v466
  %v532 = vunpack.c.l.b16 %v467
  %v533 = vunpack.c.l.b16 %v468
  %v534 = vunpack.c.l.b16 %v469
  %v535 = vunpack.c.l.b16 %v470
  %v536 = vunpack.c.l.b16 %v471
  %v537 = vunpack.c.l.b16 %v472
  %v538 = vunpack.c.l.b16 %v473
  %v539 = vunpack.c.l.b16 %v474
  %v540 = vunpack.c.l.b16 %v475
  %v541 = vunpack.c.l.b16 %v476
  %v542 = vunpack.c.l.b16 %v477
  %v543 = vunpack.c.l.b16 %v478
  %v544 = vunpack.c.l.b16 %v479
  %v545 = vunpack.c.l.b16 %v480
  %v546 = vunpack.c.l.b16 %v481
  %v547 = vunpack.c.l.b16 %v482
  %v548 = vunpack.c.l.b16 %v483
  %v549 = vunpack.c.l.b16 %v484
  %v550 = vunpack.c.l.b16 %v485
  %v551 = vunpack.c.l.b16 %v486
  %v552 = vunpack.c.l.b16 %v487
  %v553 = vunpack.c.l.b16 %v488
  %v554 = vunpack.c.l.b16 %v489
  %v555 = vunpack.c.l.b16 %v490
  %v556 = vunpack.c.l.b16 %v491
  %v557 = vunpack.c.l.b16 %v492
  %v558 = vunpack.c.l.b16 %v493
  %v559 = vpack.c.b16 %v528, %v527
  %v560 = vpack.c.b16 %v530, %v529
  %v561 = vpack.c.b16 %v532, %v531
  %v562 = vpack.c.b16 %v534, %v533
  %v563 = vpack.c.b16 %v536, %v535
  %v564 = vpack.c.b16 %v538, %v537
  %v565 = vpack.c.b16 %v540, %v539
  %v566 = vpack.c.b16 %v542, %v541
  %v567 = vpack.c.b16 %v544, %v543
  %v568 = vpack.c.b16 %v546, %v545
  %v569 = vpack.c.b16 %v548, %v547
  %v570 = vpack.c.b16 %v550, %v549
  %v571 = vpack.c.b16 %v552, %v551
  %v572 = vpack.c.b16 %v554, %v553
  %v573 = vpack.c.b16 %v556, %v555
  %v574 = vpack.c.b16 %v558, %v557
  %591 = vmatprep.subr.bf16.mxu0 0
  %592 = vmatpush1.bf16.msra.mxu0 %v559
  %593 = vmatprep.subr.bf16.mxu0 0
  %594 = vmatpush1.bf16.msra.mxu0 %v560
  %595 = vmatprep.subr.bf16.mxu0 0
  %596 = vmatpush1.bf16.msra.mxu0 %v561
  %597 = vmatprep.subr.bf16.mxu0 0
  %598 = vmatpush1.bf16.msra.mxu0 %v562
  %599 = vmatprep.subr.bf16.mxu0 0
  %600 = vmatpush1.bf16.msra.mxu0 %v563
  %601 = vmatprep.subr.bf16.mxu0 0
  %602 = vmatpush1.bf16.msra.mxu0 %v564
  %603 = vmatprep.subr.bf16.mxu0 0
  %604 = vmatpush1.bf16.msra.mxu0 %v565
  %605 = vmatprep.subr.bf16.mxu0 0
  %606 = vmatpush1.bf16.msra.mxu0 %v566
  %607 = vmatprep.subr.bf16.mxu0 0
  %608 = vmatpush1.bf16.msra.mxu0 %v567
  %609 = vmatprep.subr.bf16.mxu0 0
  %610 = vmatpush1.bf16.msra.mxu0 %v568
  %611 = vmatprep.subr.bf16.mxu0 0
  %612 = vmatpush1.bf16.msra.mxu0 %v569
  %613 = vmatprep.subr.bf16.mxu0 0
  %614 = vmatpush1.bf16.msra.mxu0 %v570
  %615 = vmatprep.subr.bf16.mxu0 0
  %616 = vmatpush1.bf16.msra.mxu0 %v571
  %617 = vmatprep.subr.bf16.mxu0 0
  %618 = vmatpush1.bf16.msra.mxu0 %v572
  %619 = vmatprep.subr.bf16.mxu0 0
  %620 = vmatpush1.bf16.msra.mxu0 %v573
  %621 = vmatprep.subr.bf16.mxu0 0
  %622 = vmatpush1.bf16.msra.mxu0 %v574
  %623 = vmatprep.mubr.bf16.mxu0 %v461
  %624 = vmatmul.mubr.bf16.gmra.mrb[0].mxu0 %v460
  %v625 = vpop.f32.mrb[0].mxu0
  %v626 = vadd.f32 %v494, %v625
  %v627 = vpop.f32.mrb[0].mxu0
  %v628 = vpop.f32.mrb[0].mxu0
  %v629 = vpop.f32.mrb[0].mxu0
  %630 = vdwg.mxu0
  %v631 = vmax.f32 %v626, 0.0
  %v632 = vpack.c.bf16 %v631, %v631
  %v633 = vld [vmem:[%s4] sm:$0xf]
  %v634 = vld [vmem:[%s4 + $0x4] sm:$0xf]
  %v635 = vld [vmem:[%s4 + $0x8] sm:$0xf]
  %v636 = vld [vmem:[%s4 + $0xc] sm:$0xf]
  %v637 = vld [vmem:[%s4 + $0x10] sm:$0xf]
  %v638 = vld [vmem:[%s4 + $0x14] sm:$0xf]
  %v639 = vld [vmem:[%s4 + $0x18] sm:$0xf]
  %v640 = vld [vmem:[%s4 + $0x1c] sm:$0xf]
  %v641 = vld [vmem:[%s4 + $0x20] sm:$0xf]
  %v642 = vld [vmem:[%s4 + $0x24] sm:$0xf]
  %v643 = vld [vmem:[%s4 + $0x28] sm:$0xf]
  %v644 = vld [vmem:[%s4 + $0x2c] sm:$0xf]
  %v645 = vld [vmem:[%s4 + $0x30] sm:$0xf]
  %v646 = vld [vmem:[%s4 + $0x34] sm:$0xf]
  %v647 = vld [vmem:[%s4 + $0x38] sm:$0xf]
  %v648 = vld [vmem:[%s4 + $0x3c] sm:$0xf]
  %v649 = vld [vmem:[%s5 + $0x5] ss:$0 sm:$0xff]
  %v666 = vunpack.c.l.b16 %v633
  %v667 = vunpack.c.l.b16 %v634
  %v668 = vunpack.c.l.b16 %v635
  %v669 = vunpack.c.l.b16 %v636
  %v670 = vunpack.c.l.b16 %v637
  %v671 = vunpack.c.l.b16 %v638
  %v672 = vunpack.c.l.b16 %v639
  %v673 = vunpack.c.l.b16 %v640
  %v674 = vunpack.c.l.b16 %v641
  %v675 = vunpack.c.l.b16 %v642
  %v676 = vunpack.c.l.b16 %v643
  %v677 = vunpack.c.l.b16 %v644
  %v678 = vunpack.c.l.b16 %v645
  %v679 = vunpack.c.l.b16 %v646
  %v680 = vunpack.c.l.b16 %v647
  %v681 = vunpack.c.l.b16 %v648
  %v682 = vpack.c.b16 %v667, %v666
  %v683 = vpack.c.b16 %v669, %v668
  %v684 = vpack.c.b16 %v671, %v670
  %v685 = vpack.c.b16 %v673, %v672
  %v686 = vpack.c.b16 %v675, %v674
  %v687 = vpack.c.b16 %v677, %v676
  %v688 = vpack.c.b16 %v679, %v678
  %v689 = vpack.c.b16 %v681, %v680
  %698 = vmatprep.subr.bf16.mxu0 0
  %699 = vmatpush1.bf16.msra.mxu0 %v682
  %700 = vmatprep.subr.bf16.mxu0 0
  %701 = vmatpush1.bf16.msra.mxu0 %v683
  %702 = vmatprep.subr.bf16.mxu0 0
  %703 = vmatpush1.bf16.msra.mxu0 %v684
  %704 = vmatprep.subr.bf16.mxu0 0
  %705 = vmatpush1.bf16.msra.mxu0 %v685
  %706 = vmatprep.subr.bf16.mxu0 0
  %707 = vmatpush1.bf16.msra.mxu0 %v686
  %708 = vmatprep.subr.bf16.mxu0 0
  %709 = vmatpush1.bf16.msra.mxu0 %v687
  %710 = vmatprep.subr.bf16.mxu0 0
  %711 = vmatpush1.bf16.msra.mxu0 %v688
  %712 = vmatprep.subr.bf16.mxu0 0
  %713 = vmatpush1.bf16.msra.mxu0 %v689
  %714 = vmatprep.subr.bf16.mxu0 0
  %715 = vmatpush1.bf16.msra.mxu0 0
  %716 = vmatprep.subr.bf16.mxu0 0
  %717 = vmatpush1.bf16.msra.mxu0 0
  %718 = vmatprep.subr.bf16.mxu0 0
  %719 = vmatpush1.bf16.msra.mxu0 0
  %720 = vmatprep.subr.bf16.mxu0 0
  %721 = vmatpush1.bf16.msra.mxu0 0
  %722 = vmatprep.subr.bf16.mxu0 0
  %723 = vmatpush1.bf16.msra.mxu0 0
  %724 = vmatprep.subr.bf16.mxu0 0
  %725 = vmatpush1.bf16.msra.mxu0 0
  %726 = vmatprep.subr.bf16.mxu0 0
  %727 = vmatpush1.bf16.msra.mxu0 0
  %728 = vmatprep.subr.bf16.mxu0 0
  %729 = vmatpush1.bf16.msra.mxu0 0
  %730 = vmatprep.mubr.bf16.mxu0 0
  %731 = vmatmul.mubr.bf16.gmra.mrb[0].mxu0 %v632
  %v732 = vpop.f32.mrb[0].mxu0
  %v733 = vadd.f32 %v649, %v732
  %v734 = vpop.f32.mrb[0].mxu0
  %v735 = vpop.f32.mrb[0].mxu0
  %v736 = vpop.f32.mrb[0].mxu0
  %737 = vdwg.mxu0
  %v738 = vtanh.pop %v733
  %739 = vst [vmem:[%s6] sm:$0xff] %v738
  // Predicated region
  $region26: #{actor_net_forward.1} parent=0 // pred_check
    _
  $region27: #{actor_net_forward.1} parent=0 // pred_check_branch
    %741 = sbr.rel (0) target = $region29
  $region28: #{actor_net_forward.1} parent=0 // pred_region
    _
  $region29: #{actor_net_forward.1} parent=0 // pred_fallthru
    _
  // Predicated region
  $region30: #{actor_net_forward.1} parent=0 // pred_check
    _
  $region31: #{actor_net_forward.1} parent=0 // pred_check_branch
    %743 = sbr.rel (0) target = $region33
  $region32: #{actor_net_forward.1} parent=0 // pred_region
    _
  $region33: #{actor_net_forward.1} parent=0 // pred_fallthru
    _

</llo_original>
